<compile_context>
chip_gen: v7x
topology: tpu7x:2x2x1
jax: 0.10.0
libtpu: 0.0.40
codegen_flags: <defaults>
</compile_context>

<pallas_src>
import jax
import jax.numpy as jnp
from jax.experimental import pallas as pl
from jax.experimental.pallas import tpu as pltpu


def lstmgcn_kernel(lhatT_ref, xw1t_ref, xw0t_ref, wco_ref, wlin_ref, blin_ref,
                   out_ref, acc_ref):
    k = pl.program_id(1)

    @pl.when(k == 0)
    def _():
        # Hop-0 Chebyshev term + all folded biases for this node (column) tile.
        acc_ref[...] = xw0t_ref[...]

    # Hop-1 Chebyshev term, transposed + reassociated:
    #   Z^T += XW1^T (4F, TK) @ L_hat^T (TK, TM)   -- bf16 operands, f32 accumulate.
    acc_ref[...] += jnp.dot(xw1t_ref[...], lhatT_ref[...],
                            preferred_element_type=jnp.float32)

    @pl.when(k == pl.num_programs(1) - 1)
    def _():
        z = acc_ref[...]                           # (4F, TM), gate order [i, f, c, o]
        fout = wco_ref.shape[0]
        zi = z[0 * fout:1 * fout, :]
        # forget gate z[1F:2F] multiplies C_prev == 0 -> contributes nothing
        zc = z[2 * fout:3 * fout, :]
        zo = z[3 * fout:4 * fout, :]

        gate_i = jax.nn.sigmoid(zi)
        cand = jnp.tanh(zc)
        c = gate_i * cand                                      # C = F*0 + I*T
        gate_o = jax.nn.sigmoid(zo + wco_ref[...] * c)         # peephole on the new C
        h = jnp.maximum(gate_o * jnp.tanh(c), 0.0)             # relu(H), (F, TM)

        # Linear(filters, 1): VPU multiply + sublane reduce -> lane-dense (1, TM) store.
        out_ref[...] = (jnp.sum(h * wlin_ref[...], axis=0, keepdims=True)
                        + blin_ref[0, 0])


def build_lhat_t(edge_index, edge_weight, num_nodes, rows_pad=None, cols_pad=None):
    """L_hat^T (source x target) = -D^{-1/2} A D^{-1/2} with 'sym' normalization and
    lambda_max = 2.0, built directly into a zero-padded (rows_pad, cols_pad) bf16 buffer.
    Column t of L_hat^T aggregates messages INTO node t (PyG target-side)."""
    rows_pad = num_nodes if rows_pad is None else rows_pad
    cols_pad = num_nodes if cols_pad is None else cols_pad
    row, col = edge_index[0], edge_index[1]
    w = edge_weight.astype(jnp.float32)
    deg = jnp.zeros((num_nodes,), jnp.float32).at[row].add(w)
    dinv = jnp.where(deg > 0, jax.lax.rsqrt(deg), 0.0)
    dinv_r = jnp.zeros((rows_pad,), jnp.float32).at[:num_nodes].set(dinv)
    dinv_c = jnp.zeros((cols_pad,), jnp.float32).at[:num_nodes].set(dinv)
    a = jnp.zeros((rows_pad, cols_pad), jnp.float32).at[row, col].add(w)
    return (-(dinv_r[:, None] * a * dinv_c[None, :])).astype(jnp.bfloat16)


def init_params(key, fin, fout):
    ks = jax.random.split(key, 5)
    scale = 0.2
    # ChebConv_x weights for gates [i, f, c, o], K=2 hops, stacked as [W0 | W1] along output axis.
    w01 = scale * jax.random.normal(ks[0], (fin, 8 * fout), jnp.float32)
    # Combined bias per gate = b(conv_x) + b(conv_h applied to H=0) + gate bias b_{i,f,c,o}.
    b = scale * jax.random.normal(ks[1], (1, 4 * fout), jnp.float32)
    # Peephole weight on the output gate (w_c_i / w_c_f multiply C_prev = 0 -> omitted).
    wco = scale * jax.random.normal(ks[2], (1, fout), jnp.float32)
    # Final Linear(filters, 1), stored as an (Fout, 1) column, plus its bias.
    wlin = scale * jax.random.normal(ks[3], (fout, 1), jnp.float32)
    blin = scale * jax.random.normal(ks[4], (1, 1), jnp.float32)
    # TODO(synk): conv_h_* kernel weights are irrelevant in this single-step forward (H starts
    # at zero); only their biases matter and are folded into `b`. A multi-step rollout would need
    # H/C state carry (input_output_aliases or an extra grid axis) plus the dropped terms.
    return dict(w01=w01, b=b, wco=wco, wlin=wlin, blin=blin)


def _ceil_to(v, m):
    return ((v + m - 1) // m) * m


def lstmgcn_forward(x, edge_index, edge_weight, params, *, tm=512, tk=512):
    n, fin = x.shape
    fout4 = params["b"].shape[-1]
    fout = fout4 // 4

    # Clamp tiles for small graphs; keep both tile dims multiples of 128 (lane width). For large
    # graphs prefer TK a multiple of 256 (v6e/v7x MXU depth) and keep gm >= 2 for megacore.
    n128 = _ceil_to(n, 128)
    tm = min(tm, n128)
    tk = min(tk, n128)
    n_pad_m = _ceil_to(n, tm)     # target-node (output column) padding
    n_pad_k = _ceil_to(n, tk)     # source-node (reduction) padding
    gm, gk = n_pad_m // tm, n_pad_k // tk

    x = x.astype(jnp.float32)

    # --- Wrapper-side precompute: the Fin=4-deep matmuls stay out of the kernel. ---
    xw = x @ params["w01"]                       # (n, 8*Fout): [X@W0 | X@W1]
    xw0 = xw[:, :fout4] + params["b"]            # hop-0 term + folded biases
    xw1 = xw[:, fout4:]

    xw0_t = jnp.zeros((fout4, n_pad_m), jnp.float32).at[:, :n].set(xw0.T)
    xw1_t = jnp.zeros((fout4, n_pad_k), jnp.bfloat16).at[:, :n].set(
        xw1.T.astype(jnp.bfloat16))

    # Dense L_hat^T streamed in bf16.
    # TODO(synk): for large sparse graphs, pass per-row-tile nonzero column-block indices via
    # PrefetchScalarGridSpec(num_scalar_prefetch=1) and skip all-zero tiles instead of streaming
    # the O(N^2) dense matrix.
    lhat_t = build_lhat_t(edge_index, edge_weight, n, n_pad_k, n_pad_m)

    grid_spec = pltpu.PrefetchScalarGridSpec(
        num_scalar_prefetch=0,
        grid=(gm, gk),
        in_specs=[
            pl.BlockSpec((tk, tm), lambda i, k: (k, i)),          # L_hat^T tile (bf16)
            pl.BlockSpec((fout4, tk), lambda i, k: (0, k)),       # XW1^T tile   (bf16)
            pl.BlockSpec((fout4, tm), lambda i, k: (0, i)),       # XW0^T + b    (f32)
            pl.BlockSpec((fout, 1), lambda i, k: (0, 0)),         # w_c_o column
            pl.BlockSpec((fout, 1), lambda i, k: (0, 0)),         # W_lin column
            pl.BlockSpec(memory_space=pltpu.MemorySpace.SMEM),    # b_lin scalar
        ],
        out_specs=pl.BlockSpec((1, tm), lambda i, k: (0, i)),     # lane-dense output row
        scratch_shapes=[pltpu.VMEM((fout4, tm), jnp.float32)],    # f32 Z^T accumulator
    )

    out = pl.pallas_call(
        lstmgcn_kernel,
        out_shape=jax.ShapeDtypeStruct((1, n_pad_m), jnp.float32),
        grid_spec=grid_spec,
        compiler_params=pltpu.CompilerParams(
            dimension_semantics=("parallel", "arbitrary"),
            vmem_limit_bytes=32 * 1024 * 1024),
    )(lhat_t, xw1_t, xw0_t,
      params["wco"].reshape(fout, 1), params["wlin"].reshape(fout, 1),
      params["blin"].reshape(1, 1))

    return out[0, :n].reshape(n, 1)


if __name__ == "__main__":
    # node_features=4, filters=32, K=2, 'sym' normalization.
    N, FIN, FOUT = 256, 4, 32

    key = jax.random.PRNGKey(0)
    kx, kw = jax.random.split(key)

    # Bidirectional ring graph on N nodes.
    src = jnp.arange(N, dtype=jnp.int32)
    dst = (src + 1) % N
    edge_index = jnp.stack([jnp.concatenate([src, dst]),
                            jnp.concatenate([dst, src])])            # (2, 2N)
    edge_weight = jax.random.uniform(kw, (2 * N,), jnp.float32, 0.5, 1.5)

    x = jax.random.normal(kx, (N, FIN), jnp.float32)
    params = init_params(jax.random.PRNGKey(1), FIN, FOUT)

    out = lstmgcn_forward(x, edge_index, edge_weight, params)
    jax.block_until_ready(out)
    assert out.shape == (N, 1) and out.dtype == jnp.float32

    # Pure-JAX reference of the same forward. The streamed L_hat / XW1 operands are quantized to
    # bf16 exactly as in the kernel so the kernel math can be checked tightly.
    fout4 = 4 * FOUT
    w0, w1 = params["w01"][:, :fout4], params["w01"][:, fout4:]
    lhat_q = build_lhat_t(edge_index, edge_weight, N).astype(jnp.float32).T   # (target, source)
    xw1_q = (x @ w1).astype(jnp.bfloat16).astype(jnp.float32)
    z = x @ w0 + params["b"] + lhat_q @ xw1_q
    gi = jax.nn.sigmoid(z[:, :FOUT])
    c = gi * jnp.tanh(z[:, 2 * FOUT:3 * FOUT])
    go = jax.nn.sigmoid(z[:, 3 * FOUT:4 * FOUT] + params["wco"] * c)
    h = jnp.maximum(go * jnp.tanh(c), 0.0)
    ref = h @ params["wlin"] + params["blin"][0, 0]

    assert bool(jnp.all(jnp.isfinite(out)))
    assert bool(jnp.allclose(out, ref, atol=5e-3, rtol=5e-3))

    print("KERNEL_OK")
</pallas_src>

<mosaic_0001>
module attributes {stable_mosaic.version = 11 : i64} {
  func.func @lstmgcn_kernel(%arg0: i32, %arg1: i32, %arg2: memref<256x256xbf16, #tpu.memory_space<vmem>>, %arg3: memref<128x256xbf16, #tpu.memory_space<vmem>>, %arg4: memref<128x256xf32, #tpu.memory_space<vmem>>, %arg5: memref<32x1xf32, #tpu.memory_space<vmem>>, %arg6: memref<32x1xf32, #tpu.memory_space<vmem>>, %arg7: memref<1x1xf32, #tpu.memory_space<smem>>, %arg8: memref<1x256xf32, #tpu.memory_space<vmem>>, %arg9: memref<128x256xf32, #tpu.memory_space<vmem>>) attributes {dimension_semantics = [#tpu.dimension_semantics<parallel>, #tpu.dimension_semantics<arbitrary>], iteration_bounds = array<i64: 1, 1>, scalar_prefetch = 0 : i64, scratch_operands = 1 : i64, tpu.core_type = #tpu.core_type<tc>, window_params = [{transform_indices = @transform_0, window_bounds = array<i64: 256, 256>}, {transform_indices = @transform_1, window_bounds = array<i64: 128, 256>}, {transform_indices = @transform_2, window_bounds = array<i64: 128, 256>}, {pipeline_mode = #tpu.pipeline_mode<synchronous>, transform_indices = @transform_3, window_bounds = array<i64: 32, 1>}, {pipeline_mode = #tpu.pipeline_mode<synchronous>, transform_indices = @transform_4, window_bounds = array<i64: 32, 1>}, {transform_indices = @transform_5, window_bounds = array<i64: 1, 1>}, {transform_indices = @transform_6, window_bounds = array<i64: 1, 256>}]} {
    %c0_i32 = arith.constant 0 : i32
    %0 = arith.cmpi eq, %arg1, %c0_i32 : i32
    %1 = arith.extui %0 : i1 to i32
    %c0_i32_0 = arith.constant 0 : i32
    %2 = arith.cmpi ne, %1, %c0_i32_0 : i32
    scf.if %2 {
      %c0_10 = arith.constant 0 : index
      %c0_11 = arith.constant 0 : index
      %12 = vector.load %arg4[%c0_10, %c0_11] : memref<128x256xf32, #tpu.memory_space<vmem>>, vector<128x256xf32>
      %c0_12 = arith.constant 0 : index
      %c0_13 = arith.constant 0 : index
      %13 = vector.load %arg9[%c0_12, %c0_13] : memref<128x256xf32, #tpu.memory_space<vmem>>, vector<128x256xf32>
      tpu.vector_store %arg9[%c0_12, %c0_13], %12 {strides = array<i32>} : memref<128x256xf32, #tpu.memory_space<vmem>>, vector<128x256xf32>,
    } else {
    }
    %c0 = arith.constant 0 : index
    %c0_1 = arith.constant 0 : index
    %3 = vector.load %arg9[%c0, %c0_1] : memref<128x256xf32, #tpu.memory_space<vmem>>, vector<128x256xf32>
    %c0_2 = arith.constant 0 : index
    %c0_3 = arith.constant 0 : index
    %4 = vector.load %arg3[%c0_2, %c0_3] : memref<128x256xbf16, #tpu.memory_space<vmem>>, vector<128x256xbf16>
    %c0_4 = arith.constant 0 : index
    %c0_5 = arith.constant 0 : index
    %5 = vector.load %arg2[%c0_4, %c0_5] : memref<256x256xbf16, #tpu.memory_space<vmem>>, vector<256x256xbf16>
    %cst = arith.constant dense<0.000000e+00> : vector<128x256xf32>
    %6 = tpu.matmul %4, %5, %cst {dimension_numbers = #tpu.dot_dimension_numbers<[1], [0], [0], [1], [0, 0, 1, 1], [], []>} : vector<128x256xbf16>, vector<256x256xbf16>, vector<128x256xf32> -> vector<128x256xf32>
    %7 = arith.addf %3, %6 : vector<128x256xf32>
    %c0_6 = arith.constant 0 : index
    %c0_7 = arith.constant 0 : index
    %8 = vector.load %arg9[%c0_6, %c0_7] : memref<128x256xf32, #tpu.memory_space<vmem>>, vector<128x256xf32>
    tpu.vector_store %arg9[%c0_6, %c0_7], %7 {strides = array<i32>} : memref<128x256xf32, #tpu.memory_space<vmem>>, vector<128x256xf32>,
    %c0_i32_8 = arith.constant 0 : i32
    %9 = arith.cmpi eq, %arg1, %c0_i32_8 : i32
    %10 = arith.extui %9 : i1 to i32
    %c0_i32_9 = arith.constant 0 : i32
    %11 = arith.cmpi ne, %10, %c0_i32_9 : i32
    scf.if %11 {
      %c0_10 = arith.constant 0 : index
      %c0_11 = arith.constant 0 : index
      %12 = vector.load %arg9[%c0_10, %c0_11] : memref<128x256xf32, #tpu.memory_space<vmem>>, vector<128x256xf32>
      %13 = vector.extract_strided_slice %12 {offsets = [0, 0], sizes = [32, 256], strides = [1, 1]} : vector<128x256xf32> to vector<32x256xf32>
      %14 = vector.extract_strided_slice %12 {offsets = [64, 0], sizes = [32, 256], strides = [1, 1]} : vector<128x256xf32> to vector<32x256xf32>
      %15 = vector.extract_strided_slice %12 {offsets = [96, 0], sizes = [32, 256], strides = [1, 1]} : vector<128x256xf32> to vector<32x256xf32>
      %16 = arith.negf %13 : vector<32x256xf32>
      %17 = math.exp %16 : vector<32x256xf32>
      %cst_12 = arith.constant 1.000000e+00 : f32
      %18 = vector.broadcast %cst_12 : f32 to vector<32x256xf32>
      %19 = arith.addf %18, %17 : vector<32x256xf32>
      %20 = arith.divf %18, %19 : vector<32x256xf32>
      %21 = math.tanh %14 : vector<32x256xf32>
      %22 = arith.mulf %20, %21 : vector<32x256xf32>
      %c0_13 = arith.constant 0 : index
      %c0_14 = arith.constant 0 : index
      %23 = vector.load %arg5[%c0_13, %c0_14] : memref<32x1xf32, #tpu.memory_space<vmem>>, vector<32x1xf32>
      %24 = vector.broadcast %23 : vector<32x1xf32> to vector<32x256xf32>
      %25 = arith.mulf %24, %22 : vector<32x256xf32>
      %26 = arith.addf %15, %25 : vector<32x256xf32>
      %27 = arith.negf %26 : vector<32x256xf32>
      %28 = math.exp %27 : vector<32x256xf32>
      %cst_15 = arith.constant 1.000000e+00 : f32
      %29 = vector.broadcast %cst_15 : f32 to vector<32x256xf32>
      %30 = arith.addf %29, %28 : vector<32x256xf32>
      %31 = arith.divf %29, %30 : vector<32x256xf32>
      %32 = math.tanh %22 : vector<32x256xf32>
      %33 = arith.mulf %31, %32 : vector<32x256xf32>
      %cst_16 = arith.constant 0.000000e+00 : f32
      %34 = vector.broadcast %cst_16 : f32 to vector<32x256xf32>
      %35 = arith.maximumf %33, %34 : vector<32x256xf32>
      %c0_17 = arith.constant 0 : index
      %c0_18 = arith.constant 0 : index
      %36 = vector.load %arg6[%c0_17, %c0_18] : memref<32x1xf32, #tpu.memory_space<vmem>>, vector<32x1xf32>
      %37 = vector.broadcast %36 : vector<32x1xf32> to vector<32x256xf32>
      %38 = arith.mulf %35, %37 : vector<32x256xf32>
      %cst_19 = arith.constant dense<0.000000e+00> : vector<256xf32>
      %39 = vector.multi_reduction <add>, %38, %cst_19 [0] : vector<32x256xf32> to vector<256xf32>
      %40 = vector.shape_cast %39 : vector<256xf32> to vector<1x256xf32>
      %c0_20 = arith.constant 0 : index
      %c0_21 = arith.constant 0 : index
      %41 = memref.load %arg7[%c0_20, %c0_21] : memref<1x1xf32, #tpu.memory_space<smem>>
      %42 = vector.broadcast %41 : f32 to vector<1x256xf32>
      %43 = arith.addf %40, %42 : vector<1x256xf32>
      %c0_22 = arith.constant 0 : index
      %c0_23 = arith.constant 0 : index
      %44 = vector.load %arg8[%c0_22, %c0_23] : memref<1x256xf32, #tpu.memory_space<vmem>>, vector<1x256xf32>
      tpu.vector_store %arg8[%c0_22, %c0_23], %43 {strides = array<i32>} : memref<1x256xf32, #tpu.memory_space<vmem>>, vector<1x256xf32>,
    } else {
    }
    return
  }
  func.func @transform_0(%arg0: i32, %arg1: i32) -> (i32, i32) {
    %c0_i32 = arith.constant 0 : i32
    return %arg1, %arg0 : i32, i32
  }
  func.func @transform_1(%arg0: i32, %arg1: i32) -> (i32, i32) {
    %c0_i32 = arith.constant 0 : i32
    %c0_i32_0 = arith.constant 0 : i32
    return %c0_i32, %arg1 : i32, i32
  }
  func.func @transform_2(%arg0: i32, %arg1: i32) -> (i32, i32) {
    %c0_i32 = arith.constant 0 : i32
    %c0_i32_0 = arith.constant 0 : i32
    return %c0_i32, %arg0 : i32, i32
  }
  func.func @transform_3(%arg0: i32, %arg1: i32) -> (i32, i32) {
    %c0_i32 = arith.constant 0 : i32
    %c0_i32_0 = arith.constant 0 : i32
    %c0_i32_1 = arith.constant 0 : i32
    return %c0_i32, %c0_i32_0 : i32, i32
  }
  func.func @transform_4(%arg0: i32, %arg1: i32) -> (i32, i32) {
    %c0_i32 = arith.constant 0 : i32
    %c0_i32_0 = arith.constant 0 : i32
    %c0_i32_1 = arith.constant 0 : i32
    return %c0_i32, %c0_i32_0 : i32, i32
  }
  func.func @transform_5(%arg0: i32, %arg1: i32) -> (i32, i32) {
    %c0_i32 = arith.constant 0 : i32
    %c0_i32_0 = arith.constant 0 : i32
    %c0_i32_1 = arith.constant 0 : i32
    return %c0_i32, %c0_i32_0 : i32, i32
  }
  func.func @transform_6(%arg0: i32, %arg1: i32) -> (i32, i32) {
    %c0_i32 = arith.constant 0 : i32
    %c0_i32_0 = arith.constant 0 : i32
    return %c0_i32, %arg0 : i32, i32
  }
}

</mosaic_0001>

<llo_original>
// kernel: tpu_custom_call.1
$region0: #{tpu_custom_call.1}
  #allocation0 [shape = 'u32[]', space=smem, size = 0x4, offset = 0x4, fixed_abs, tag = 'smem constant byte address 0x4 - core index']
  #allocation1 [shape = 'u32[144,128]{1,0:T(1,128)}', space=vmem, size = 0x12000, scoped, tag = 'internal scratch']
  #allocation2 [shape = 'f32[128,256]{1,0:T(8,128)}', space=vmem, size = 0x20000, scoped, tag = 'scratch operand']
  #allocation3 [shape = 'f32[1,1]{1,0:T(1,128)S(6)}', space=smem, size = 0x200, scoped, tag = 'scoped memory for tpu_custom_call.1']
  %s0 = inlined_call_operand.hbm [shape: bf16[256,256], index: 0, kind: input, shape index: {}]
  %s1 = inlined_call_operand.hbm [shape: bf16[128,256], index: 1, kind: input, shape index: {}]
  %s2 = inlined_call_operand.hbm [shape: f32[128,256], index: 2, kind: input, shape index: {}]
  %s3 = inlined_call_operand.vmem [shape: f32[32,1], index: 3, kind: input, shape index: {}]
  %s4 = inlined_call_operand.vmem [shape: f32[32,1], index: 4, kind: input, shape index: {}]
  %s5 = inlined_call_operand.<no memory space> [shape: f32[1,1], index: 5, kind: input, shape index: {}]
  %s6 = inlined_call_operand.hbm [shape: f32[1,256], index: 6, kind: output, shape index: {}]
  %s7 = sld [smem:[#allocation0]]
  $region54: #{tpu_custom_call.1} parent=0
    _
  %s9 = ssub.s32 1, %s7
  %s10 = scalar_select 0, %s9, %s7
  %11 = sst [smem:[#allocation3]] %s5
  $region1: #{tpu_custom_call.1} parent=0
    #allocation4 [shape = 'u8[131072]{0}', space=vmem, size = 0x20000, scoped, tag = 'input window, operand 0, single buffered']
    #allocation5 [shape = 's32[1]{0}', space=sflag, size = 0x4, scoped, tag = 'scoped memory for tpu_custom_call.1']
    #allocation6 [shape = 's32[1]{0}', space=sflag, size = 0x4, scoped, tag = 'scoped memory for tpu_custom_call.1']
    #allocation7 [shape = 'u8[65536]{0}', space=vmem, size = 0x10000, scoped, tag = 'input window, operand 1, single buffered']
    #allocation8 [shape = 's32[1]{0}', space=sflag, size = 0x4, scoped, tag = 'scoped memory for tpu_custom_call.1']
    #allocation9 [shape = 'u8[131072]{0}', space=vmem, size = 0x20000, scoped, tag = 'input window, operand 2, single buffered']
    #allocation10 [shape = 'u8[1024]{0}', space=vmem, size = 0x400, scoped, tag = 'output window, operand 0, single buffered']
    %12 = vsyncpa [#allocation5], 0
    %13 = vsyncpa [#allocation8], 0
    %14 = vsyncpa [#allocation6], 0
    // Predicated region
    $region2: #{tpu_custom_call.1} parent=1 // pred_check
      _
    $region3: #{tpu_custom_call.1} parent=1 // pred_check_branch
      %16 = sbr.rel (0) target = $region5
    $region4: #{tpu_custom_call.1} parent=1 // pred_region
      %s18 = ssub.s32 4096, 4096
      %19 = vsyncadd [#allocation5], %s18
      %s20 = sshll.u32 [#allocation4], 4
      %s21 = int_to_ptr.vmem [resolvable:$true] %s20
      %26 = dma.hbm_to_vmem [thread:$0]  %s0, 4096, %s21, [#allocation5], 128, 128, 8
    $region5: #{tpu_custom_call.1} parent=1 // pred_fallthru
      _
    // Predicated region
    $region6: #{tpu_custom_call.1} parent=1 // pred_check
      _
    $region7: #{tpu_custom_call.1} parent=1 // pred_check_branch
      %28 = sbr.rel (0) target = $region9
    $region8: #{tpu_custom_call.1} parent=1 // pred_region
      %s30 = ssub.s32 2048, 2048
      %31 = vsyncadd [#allocation8], %s30
      %s32 = sshll.u32 [#allocation7], 4
      %s33 = int_to_ptr.vmem [resolvable:$true] %s32
      %38 = dma.hbm_to_vmem [thread:$0]  %s1, 2048, %s33, [#allocation8], 128, 128, 8
    $region9: #{tpu_custom_call.1} parent=1 // pred_fallthru
      _
    // Predicated region
    $region10: #{tpu_custom_call.1} parent=1 // pred_check
      _
    $region11: #{tpu_custom_call.1} parent=1 // pred_check_branch
      %40 = sbr.rel (0) target = $region13
    $region12: #{tpu_custom_call.1} parent=1 // pred_region
      %s42 = ssub.s32 4096, 4096
      %43 = vsyncadd [#allocation8], %s42
      %s44 = sshll.u32 [#allocation9], 4
      %s45 = int_to_ptr.vmem [resolvable:$true] %s44
      %50 = dma.hbm_to_vmem [thread:$0]  %s2, 4096, %s45, [#allocation8], 256, 256, 16
    $region13: #{tpu_custom_call.1} parent=1 // pred_fallthru
      _
    // Predicated region
    $region14: #{tpu_custom_call.1} parent=1 // pred_check
      _
    $region15: #{tpu_custom_call.1} parent=1 // pred_check_branch
      %52 = sbr.rel (0) target = $region17
    $region16: #{tpu_custom_call.1} parent=1 // pred_region
      _
    $region17: #{tpu_custom_call.1} parent=1 // pred_fallthru
      _
    // Predicated region
    $region18: #{tpu_custom_call.1} parent=1 // pred_check
      _
    $region19: #{tpu_custom_call.1} parent=1 // pred_check_branch
      %54 = sbr.rel (0) target = $region21
    $region20: #{tpu_custom_call.1} parent=1 // pred_region
      _
    $region21: #{tpu_custom_call.1} parent=1 // pred_fallthru
      _
    // Predicated region
    $region22: #{tpu_custom_call.1} parent=1 // pred_check
      _
    $region23: #{tpu_custom_call.1} parent=1 // pred_check_branch
      %56 = sbr.rel (0) target = $region25
    $region24: #{tpu_custom_call.1} parent=1 // pred_region
      _
    $region25: #{tpu_custom_call.1} parent=1 // pred_fallthru
      _
    // Predicated region
    $region26: #{tpu_custom_call.1} parent=1 // pred_check
      _
    $region27: #{tpu_custom_call.1} parent=1 // pred_check_branch
      %58 = sbr.rel (0) target = $region29
    $region28: #{tpu_custom_call.1} parent=1 // pred_region
      %59 = dma.done [#allocation5], 4096
    $region29: #{tpu_custom_call.1} parent=1 // pred_fallthru
      _
    // Predicated region
    $region30: #{tpu_custom_call.1} parent=1 // pred_check
      _
    $region31: #{tpu_custom_call.1} parent=1 // pred_check_branch
      %61 = sbr.rel (0) target = $region33
    $region32: #{tpu_custom_call.1} parent=1 // pred_region
      %62 = dma.done [#allocation8], 2048
    $region33: #{tpu_custom_call.1} parent=1 // pred_fallthru
      _
    // Predicated region
    $region34: #{tpu_custom_call.1} parent=1 // pred_check
      _
    $region35: #{tpu_custom_call.1} parent=1 // pred_check_branch
      %64 = sbr.rel (0) target = $region37
    $region36: #{tpu_custom_call.1} parent=1 // pred_region
      %65 = dma.done [#allocation8], 4096
    $region37: #{tpu_custom_call.1} parent=1 // pred_fallthru
      _
    %p66 = scmp.eq.s32.totalorder 0, 0
    // Predicated region
    $region38: #{tpu_custom_call.1} parent=1 // pred_check
      %p67 = pneg %p66
    $region39: #{tpu_custom_call.1} parent=1 // pred_check_branch
      %69 = sbr.rel (%p67) target = $region41
    $region40: #{tpu_custom_call.1} parent=1 // pred_region
      %v70 = vld [vmem:[#allocation9] sm:$0xff]
      %v71 = vld [vmem:[#allocation9 + $0x8] sm:$0xff]
      %v72 = vld [vmem:[#allocation9 + $0x10] sm:$0xff]
      %v73 = vld [vmem:[#allocation9 + $0x18] sm:$0xff]
      %v74 = vld [vmem:[#allocation9 + $0x20] sm:$0xff]
      %v75 = vld [vmem:[#allocation9 + $0x28] sm:$0xff]
      %v76 = vld [vmem:[#allocation9 + $0x30] sm:$0xff]
      %v77 = vld [vmem:[#allocation9 + $0x38] sm:$0xff]
      %v78 = vld [vmem:[#allocation9 + $0x40] sm:$0xff]
      %v79 = vld [vmem:[#allocation9 + $0x48] sm:$0xff]
      %v80 = vld [vmem:[#allocation9 + $0x50] sm:$0xff]
      %v81 = vld [vmem:[#allocation9 + $0x58] sm:$0xff]
      %v82 = vld [vmem:[#allocation9 + $0x60] sm:$0xff]
      %v83 = vld [vmem:[#allocation9 + $0x68] sm:$0xff]
      %v84 = vld [vmem:[#allocation9 + $0x70] sm:$0xff]
      %v85 = vld [vmem:[#allocation9 + $0x78] sm:$0xff]
      %v86 = vld [vmem:[#allocation9 + $0x80] sm:$0xff]
      %v87 = vld [vmem:[#allocation9 + $0x88] sm:$0xff]
      %v88 = vld [vmem:[#allocation9 + $0x90] sm:$0xff]
      %v89 = vld [vmem:[#allocation9 + $0x98] sm:$0xff]
      %v90 = vld [vmem:[#allocation9 + $0xa0] sm:$0xff]
      %v91 = vld [vmem:[#allocation9 + $0xa8] sm:$0xff]
      %v92 = vld [vmem:[#allocation9 + $0xb0] sm:$0xff]
      %v93 = vld [vmem:[#allocation9 + $0xb8] sm:$0xff]
      %v94 = vld [vmem:[#allocation9 + $0xc0] sm:$0xff]
      %v95 = vld [vmem:[#allocation9 + $0xc8] sm:$0xff]
      %v96 = vld [vmem:[#allocation9 + $0xd0] sm:$0xff]
      %v97 = vld [vmem:[#allocation9 + $0xd8] sm:$0xff]
      %v98 = vld [vmem:[#allocation9 + $0xe0] sm:$0xff]
      %v99 = vld [vmem:[#allocation9 + $0xe8] sm:$0xff]
      %v100 = vld [vmem:[#allocation9 + $0xf0] sm:$0xff]
      %v101 = vld [vmem:[#allocation9 + $0xf8] sm:$0xff]
      %102 = vst [vmem:[#allocation2] sm:$0xff] %v70
      %103 = vst [vmem:[#allocation2 + $0x8] sm:$0xff] %v71
      %104 = vst [vmem:[#allocation2 + $0x10] sm:$0xff] %v72
      %105 = vst [vmem:[#allocation2 + $0x18] sm:$0xff] %v73
      %106 = vst [vmem:[#allocation2 + $0x20] sm:$0xff] %v74
      %107 = vst [vmem:[#allocation2 + $0x28] sm:$0xff] %v75
      %108 = vst [vmem:[#allocation2 + $0x30] sm:$0xff] %v76
      %109 = vst [vmem:[#allocation2 + $0x38] sm:$0xff] %v77
      %110 = vst [vmem:[#allocation2 + $0x40] sm:$0xff] %v78
      %111 = vst [vmem:[#allocation2 + $0x48] sm:$0xff] %v79
      %112 = vst [vmem:[#allocation2 + $0x50] sm:$0xff] %v80
      %113 = vst [vmem:[#allocation2 + $0x58] sm:$0xff] %v81
      %114 = vst [vmem:[#allocation2 + $0x60] sm:$0xff] %v82
      %115 = vst [vmem:[#allocation2 + $0x68] sm:$0xff] %v83
      %116 = vst [vmem:[#allocation2 + $0x70] sm:$0xff] %v84
      %117 = vst [vmem:[#allocation2 + $0x78] sm:$0xff] %v85
      %118 = vst [vmem:[#allocation2 + $0x80] sm:$0xff] %v86
      %119 = vst [vmem:[#allocation2 + $0x88] sm:$0xff] %v87
      %120 = vst [vmem:[#allocation2 + $0x90] sm:$0xff] %v88
      %121 = vst [vmem:[#allocation2 + $0x98] sm:$0xff] %v89
      %122 = vst [vmem:[#allocation2 + $0xa0] sm:$0xff] %v90
      %123 = vst [vmem:[#allocation2 + $0xa8] sm:$0xff] %v91
      %124 = vst [vmem:[#allocation2 + $0xb0] sm:$0xff] %v92
      %125 = vst [vmem:[#allocation2 + $0xb8] sm:$0xff] %v93
      %126 = vst [vmem:[#allocation2 + $0xc0] sm:$0xff] %v94
      %127 = vst [vmem:[#allocation2 + $0xc8] sm:$0xff] %v95
      %128 = vst [vmem:[#allocation2 + $0xd0] sm:$0xff] %v96
      %129 = vst [vmem:[#allocation2 + $0xd8] sm:$0xff] %v97
      %130 = vst [vmem:[#allocation2 + $0xe0] sm:$0xff] %v98
      %131 = vst [vmem:[#allocation2 + $0xe8] sm:$0xff] %v99
      %132 = vst [vmem:[#allocation2 + $0xf0] sm:$0xff] %v100
      %133 = vst [vmem:[#allocation2 + $0xf8] sm:$0xff] %v101
    $region41: #{tpu_custom_call.1} parent=1 // pred_fallthru
      _
    %v134 = vld [vmem:[#allocation2] sm:$0xff]
    %v135 = vld [vmem:[#allocation2 + $0x8] sm:$0xff]
    %v136 = vld [vmem:[#allocation2 + $0x10] sm:$0xff]
    %v137 = vld [vmem:[#allocation2 + $0x18] sm:$0xff]
    %v138 = vld [vmem:[#allocation2 + $0x20] sm:$0xff]
    %v139 = vld [vmem:[#allocation2 + $0x28] sm:$0xff]
    %v140 = vld [vmem:[#allocation2 + $0x30] sm:$0xff]
    %v141 = vld [vmem:[#allocation2 + $0x38] sm:$0xff]
    %v142 = vld [vmem:[#allocation2 + $0x40] sm:$0xff]
    %v143 = vld [vmem:[#allocation2 + $0x48] sm:$0xff]
    %v144 = vld [vmem:[#allocation2 + $0x50] sm:$0xff]
    %v145 = vld [vmem:[#allocation2 + $0x58] sm:$0xff]
    %v146 = vld [vmem:[#allocation2 + $0x60] sm:$0xff]
    %v147 = vld [vmem:[#allocation2 + $0x68] sm:$0xff]
    %v148 = vld [vmem:[#allocation2 + $0x70] sm:$0xff]
    %v149 = vld [vmem:[#allocation2 + $0x78] sm:$0xff]
    %v150 = vld [vmem:[#allocation2 + $0x80] sm:$0xff]
    %v151 = vld [vmem:[#allocation2 + $0x88] sm:$0xff]
    %v152 = vld [vmem:[#allocation2 + $0x90] sm:$0xff]
    %v153 = vld [vmem:[#allocation2 + $0x98] sm:$0xff]
    %v154 = vld [vmem:[#allocation2 + $0xa0] sm:$0xff]
    %v155 = vld [vmem:[#allocation2 + $0xa8] sm:$0xff]
    %v156 = vld [vmem:[#allocation2 + $0xb0] sm:$0xff]
    %v157 = vld [vmem:[#allocation2 + $0xb8] sm:$0xff]
    %v158 = vld [vmem:[#allocation2 + $0xc0] sm:$0xff]
    %v159 = vld [vmem:[#allocation2 + $0xc8] sm:$0xff]
    %v160 = vld [vmem:[#allocation2 + $0xd0] sm:$0xff]
    %v161 = vld [vmem:[#allocation2 + $0xd8] sm:$0xff]
    %v162 = vld [vmem:[#allocation2 + $0xe0] sm:$0xff]
    %v163 = vld [vmem:[#allocation2 + $0xe8] sm:$0xff]
    %v164 = vld [vmem:[#allocation2 + $0xf0] sm:$0xff]
    %v165 = vld [vmem:[#allocation2 + $0xf8] sm:$0xff]
    %v166 = vld [vmem:[#allocation7] sm:$0xff]
    %v167 = vld [vmem:[#allocation7 + $0x8] sm:$0xff]
    %v168 = vld [vmem:[#allocation7 + $0x10] sm:$0xff]
    %v169 = vld [vmem:[#allocation7 + $0x18] sm:$0xff]
    %v170 = vld [vmem:[#allocation7 + $0x20] sm:$0xff]
    %v171 = vld [vmem:[#allocation7 + $0x28] sm:$0xff]
    %v172 = vld [vmem:[#allocation7 + $0x30] sm:$0xff]
    %v173 = vld [vmem:[#allocation7 + $0x38] sm:$0xff]
    %v174 = vld [vmem:[#allocation7 + $0x40] sm:$0xff]
    %v175 = vld [vmem:[#allocation7 + $0x48] sm:$0xff]
    %v176 = vld [vmem:[#allocation7 + $0x50] sm:$0xff]
    %v177 = vld [vmem:[#allocation7 + $0x58] sm:$0xff]
    %v178 = vld [vmem:[#allocation7 + $0x60] sm:$0xff]
    %v179 = vld [vmem:[#allocation7 + $0x68] sm:$0xff]
    %v180 = vld [vmem:[#allocation7 + $0x70] sm:$0xff]
    %v181 = vld [vmem:[#allocation7 + $0x78] sm:$0xff]
    %v182 = vld [vmem:[#allocation4] sm:$0xff]
    %v183 = vld [vmem:[#allocation4 + $0x8] sm:$0xff]
    %v184 = vld [vmem:[#allocation4 + $0x10] sm:$0xff]
    %v185 = vld [vmem:[#allocation4 + $0x18] sm:$0xff]
    %v186 = vld [vmem:[#allocation4 + $0x20] sm:$0xff]
    %v187 = vld [vmem:[#allocation4 + $0x28] sm:$0xff]
    %v188 = vld [vmem:[#allocation4 + $0x30] sm:$0xff]
    %v189 = vld [vmem:[#allocation4 + $0x38] sm:$0xff]
    %v190 = vld [vmem:[#allocation4 + $0x40] sm:$0xff]
    %v191 = vld [vmem:[#allocation4 + $0x48] sm:$0xff]
    %v192 = vld [vmem:[#allocation4 + $0x50] sm:$0xff]
    %v193 = vld [vmem:[#allocation4 + $0x58] sm:$0xff]
    %v194 = vld [vmem:[#allocation4 + $0x60] sm:$0xff]
    %v195 = vld [vmem:[#allocation4 + $0x68] sm:$0xff]
    %v196 = vld [vmem:[#allocation4 + $0x70] sm:$0xff]
    %v197 = vld [vmem:[#allocation4 + $0x78] sm:$0xff]
    %v198 = vld [vmem:[#allocation4 + $0x80] sm:$0xff]
    %v199 = vld [vmem:[#allocation4 + $0x88] sm:$0xff]
    %v200 = vld [vmem:[#allocation4 + $0x90] sm:$0xff]
    %v201 = vld [vmem:[#allocation4 + $0x98] sm:$0xff]
    %v202 = vld [vmem:[#allocation4 + $0xa0] sm:$0xff]
    %v203 = vld [vmem:[#allocation4 + $0xa8] sm:$0xff]
    %v204 = vld [vmem:[#allocation4 + $0xb0] sm:$0xff]
    %v205 = vld [vmem:[#allocation4 + $0xb8] sm:$0xff]
    %v206 = vld [vmem:[#allocation4 + $0xc0] sm:$0xff]
    %v207 = vld [vmem:[#allocation4 + $0xc8] sm:$0xff]
    %v208 = vld [vmem:[#allocation4 + $0xd0] sm:$0xff]
    %v209 = vld [vmem:[#allocation4 + $0xd8] sm:$0xff]
    %v210 = vld [vmem:[#allocation4 + $0xe0] sm:$0xff]
    %v211 = vld [vmem:[#allocation4 + $0xe8] sm:$0xff]
    %v212 = vld [vmem:[#allocation4 + $0xf0] sm:$0xff]
    %v213 = vld [vmem:[#allocation4 + $0xf8] sm:$0xff]
    %v230 = vunpack.c.l.b16 %v166
    %v231 = vunpack.c.h.b16 %v166
    %v232 = vunpack.c.l.b16 %v167
    %v233 = vunpack.c.h.b16 %v167
    %v234 = vunpack.c.l.b16 %v168
    %v235 = vunpack.c.h.b16 %v168
    %v236 = vunpack.c.l.b16 %v169
    %v237 = vunpack.c.h.b16 %v169
    %v238 = vunpack.c.l.b16 %v170
    %v239 = vunpack.c.h.b16 %v170
    %v240 = vunpack.c.l.b16 %v171
    %v241 = vunpack.c.h.b16 %v171
    %v242 = vunpack.c.l.b16 %v172
    %v243 = vunpack.c.h.b16 %v172
    %v244 = vunpack.c.l.b16 %v173
    %v245 = vunpack.c.h.b16 %v173
    %v246 = vunpack.c.l.b16 %v174
    %v247 = vunpack.c.h.b16 %v174
    %v248 = vunpack.c.l.b16 %v175
    %v249 = vunpack.c.h.b16 %v175
    %v250 = vunpack.c.l.b16 %v176
    %v251 = vunpack.c.h.b16 %v176
    %v252 = vunpack.c.l.b16 %v177
    %v253 = vunpack.c.h.b16 %v177
    %v254 = vunpack.c.l.b16 %v178
    %v255 = vunpack.c.h.b16 %v178
    %v256 = vunpack.c.l.b16 %v179
    %v257 = vunpack.c.h.b16 %v179
    %v258 = vunpack.c.l.b16 %v180
    %v259 = vunpack.c.h.b16 %v180
    %v260 = vunpack.c.l.b16 %v181
    %v261 = vunpack.c.h.b16 %v181
    %v262 = vpack.c.b16 %v232, %v230
    %v263 = vpack.c.b16 %v233, %v231
    %v264 = vpack.c.b16 %v236, %v234
    %v265 = vpack.c.b16 %v237, %v235
    %v266 = vpack.c.b16 %v240, %v238
    %v267 = vpack.c.b16 %v241, %v239
    %v268 = vpack.c.b16 %v244, %v242
    %v269 = vpack.c.b16 %v245, %v243
    %v270 = vpack.c.b16 %v248, %v246
    %v271 = vpack.c.b16 %v249, %v247
    %v272 = vpack.c.b16 %v252, %v250
    %v273 = vpack.c.b16 %v253, %v251
    %v274 = vpack.c.b16 %v256, %v254
    %v275 = vpack.c.b16 %v257, %v255
    %v276 = vpack.c.b16 %v260, %v258
    %v277 = vpack.c.b16 %v261, %v259
    %v326 = vunpack.c.l.b16 %v182
    %v327 = vunpack.c.h.b16 %v182
    %v328 = vunpack.c.l.b16 %v183
    %v329 = vunpack.c.h.b16 %v183
    %v330 = vunpack.c.l.b16 %v184
    %v331 = vunpack.c.h.b16 %v184
    %v332 = vunpack.c.l.b16 %v185
    %v333 = vunpack.c.h.b16 %v185
    %v334 = vunpack.c.l.b16 %v186
    %v335 = vunpack.c.h.b16 %v186
    %v336 = vunpack.c.l.b16 %v187
    %v337 = vunpack.c.h.b16 %v187
    %v338 = vunpack.c.l.b16 %v188
    %v339 = vunpack.c.h.b16 %v188
    %v340 = vunpack.c.l.b16 %v189
    %v341 = vunpack.c.h.b16 %v189
    %v342 = vunpack.c.l.b16 %v190
    %v343 = vunpack.c.h.b16 %v190
    %v344 = vunpack.c.l.b16 %v191
    %v345 = vunpack.c.h.b16 %v191
    %v346 = vunpack.c.l.b16 %v192
    %v347 = vunpack.c.h.b16 %v192
    %v348 = vunpack.c.l.b16 %v193
    %v349 = vunpack.c.h.b16 %v193
    %v350 = vunpack.c.l.b16 %v194
    %v351 = vunpack.c.h.b16 %v194
    %v352 = vunpack.c.l.b16 %v195
    %v353 = vunpack.c.h.b16 %v195
    %v354 = vunpack.c.l.b16 %v196
    %v355 = vunpack.c.h.b16 %v196
    %v356 = vunpack.c.l.b16 %v197
    %v357 = vunpack.c.h.b16 %v197
    %v358 = vunpack.c.l.b16 %v198
    %v359 = vunpack.c.h.b16 %v198
    %v360 = vunpack.c.l.b16 %v199
    %v361 = vunpack.c.h.b16 %v199
    %v362 = vunpack.c.l.b16 %v200
    %v363 = vunpack.c.h.b16 %v200
    %v364 = vunpack.c.l.b16 %v201
    %v365 = vunpack.c.h.b16 %v201
    %v366 = vunpack.c.l.b16 %v202
    %v367 = vunpack.c.h.b16 %v202
    %v368 = vunpack.c.l.b16 %v203
    %v369 = vunpack.c.h.b16 %v203
    %v370 = vunpack.c.l.b16 %v204
    %v371 = vunpack.c.h.b16 %v204
    %v372 = vunpack.c.l.b16 %v205
    %v373 = vunpack.c.h.b16 %v205
    %v374 = vunpack.c.l.b16 %v206
    %v375 = vunpack.c.h.b16 %v206
    %v376 = vunpack.c.l.b16 %v207
    %v377 = vunpack.c.h.b16 %v207
    %v378 = vunpack.c.l.b16 %v208
    %v379 = vunpack.c.h.b16 %v208
    %v380 = vunpack.c.l.b16 %v209
    %v381 = vunpack.c.h.b16 %v209
    %v382 = vunpack.c.l.b16 %v210
    %v383 = vunpack.c.h.b16 %v210
    %v384 = vunpack.c.l.b16 %v211
    %v385 = vunpack.c.h.b16 %v211
    %v386 = vunpack.c.l.b16 %v212
    %v387 = vunpack.c.h.b16 %v212
    %v388 = vunpack.c.l.b16 %v213
    %v389 = vunpack.c.h.b16 %v213
    %v390 = vpack.c.b16 %v328, %v326
    %v391 = vpack.c.b16 %v329, %v327
    %v392 = vpack.c.b16 %v332, %v330
    %v393 = vpack.c.b16 %v333, %v331
    %v394 = vpack.c.b16 %v336, %v334
    %v395 = vpack.c.b16 %v337, %v335
    %v396 = vpack.c.b16 %v340, %v338
    %v397 = vpack.c.b16 %v341, %v339
    %v398 = vpack.c.b16 %v344, %v342
    %v399 = vpack.c.b16 %v345, %v343
    %v400 = vpack.c.b16 %v348, %v346
    %v401 = vpack.c.b16 %v349, %v347
    %v402 = vpack.c.b16 %v352, %v350
    %v403 = vpack.c.b16 %v353, %v351
    %v404 = vpack.c.b16 %v356, %v354
    %v405 = vpack.c.b16 %v357, %v355
    %v406 = vpack.c.b16 %v360, %v358
    %v407 = vpack.c.b16 %v361, %v359
    %v408 = vpack.c.b16 %v364, %v362
    %v409 = vpack.c.b16 %v365, %v363
    %v410 = vpack.c.b16 %v368, %v366
    %v411 = vpack.c.b16 %v369, %v367
    %v412 = vpack.c.b16 %v372, %v370
    %v413 = vpack.c.b16 %v373, %v371
    %v414 = vpack.c.b16 %v376, %v374
    %v415 = vpack.c.b16 %v377, %v375
    %v416 = vpack.c.b16 %v380, %v378
    %v417 = vpack.c.b16 %v381, %v379
    %v418 = vpack.c.b16 %v384, %v382
    %v419 = vpack.c.b16 %v385, %v383
    %v420 = vpack.c.b16 %v388, %v386
    %v421 = vpack.c.b16 %v389, %v387
    %454 = vmatprep.subr.bf16.mxu0 %v391
    %455 = vmatpush1.bf16.msra.mxu0 %v390
    %456 = vmatprep.subr.bf16.mxu0 %v393
    %457 = vmatpush1.bf16.msra.mxu0 %v392
    %458 = vmatprep.subr.bf16.mxu0 %v395
    %459 = vmatpush1.bf16.msra.mxu0 %v394
    %460 = vmatprep.subr.bf16.mxu0 %v397
    %461 = vmatpush1.bf16.msra.mxu0 %v396
    %462 = vmatprep.subr.bf16.mxu0 %v399
    %463 = vmatpush1.bf16.msra.mxu0 %v398
    %464 = vmatprep.subr.bf16.mxu0 %v401
    %465 = vmatpush1.bf16.msra.mxu0 %v400
    %466 = vmatprep.subr.bf16.mxu0 %v403
    %467 = vmatpush1.bf16.msra.mxu0 %v402
    %468 = vmatprep.subr.bf16.mxu0 %v405
    %469 = vmatpush1.bf16.msra.mxu0 %v404
    %470 = vmatprep.subr.bf16.mxu0 %v407
    %471 = vmatpush1.bf16.msra.mxu0 %v406
    %472 = vmatprep.subr.bf16.mxu0 %v409
    %473 = vmatpush1.bf16.msra.mxu0 %v408
    %474 = vmatprep.subr.bf16.mxu0 %v411
    %475 = vmatpush1.bf16.msra.mxu0 %v410
    %476 = vmatprep.subr.bf16.mxu0 %v413
    %477 = vmatpush1.bf16.msra.mxu0 %v412
    %478 = vmatprep.subr.bf16.mxu0 %v415
    %479 = vmatpush1.bf16.msra.mxu0 %v414
    %480 = vmatprep.subr.bf16.mxu0 %v417
    %481 = vmatpush1.bf16.msra.mxu0 %v416
    %482 = vmatprep.subr.bf16.mxu0 %v419
    %483 = vmatpush1.bf16.msra.mxu0 %v418
    %484 = vmatprep.subr.bf16.mxu0 %v421
    %485 = vmatpush1.bf16.msra.mxu0 %v420
    %486 = vmatprep.mubr.bf16.mxu0 %v263
    %487 = vmatmul.mubr.bf16.gmra.mrb[0].mxu0 %v262
    %v488 = vpop.f32.mrb[0].mxu0
    %v489 = vadd.f32 0.0, %v488
    %v490 = vpop.f32.mrb[0].mxu0
    %v491 = vadd.f32 0.0, %v490
    %v492 = vpop.f32.mrb[0].mxu0
    %v493 = vadd.f32 0.0, %v492
    %v494 = vpop.f32.mrb[0].mxu0
    %v495 = vadd.f32 0.0, %v494
    %496 = vmatprep.mubr.bf16.mxu0 %v265
    %497 = vmatmul.mubr.bf16.gmra.mrb[0].mxu0 %v264
    %v498 = vpop.f32.mrb[0].mxu0
    %v499 = vadd.f32 0.0, %v498
    %v500 = vpop.f32.mrb[0].mxu0
    %v501 = vadd.f32 0.0, %v500
    %v502 = vpop.f32.mrb[0].mxu0
    %v503 = vadd.f32 0.0, %v502
    %v504 = vpop.f32.mrb[0].mxu0
    %v505 = vadd.f32 0.0, %v504
    %506 = vmatprep.mubr.bf16.mxu0 %v267
    %507 = vmatmul.mubr.bf16.gmra.mrb[0].mxu0 %v266
    %v508 = vpop.f32.mrb[0].mxu0
    %v509 = vadd.f32 0.0, %v508
    %v510 = vpop.f32.mrb[0].mxu0
    %v511 = vadd.f32 0.0, %v510
    %v512 = vpop.f32.mrb[0].mxu0
    %v513 = vadd.f32 0.0, %v512
    %v514 = vpop.f32.mrb[0].mxu0
    %v515 = vadd.f32 0.0, %v514
    %516 = vmatprep.mubr.bf16.mxu0 %v269
    %517 = vmatmul.mubr.bf16.gmra.mrb[0].mxu0 %v268
    %v518 = vpop.f32.mrb[0].mxu0
    %v519 = vadd.f32 0.0, %v518
    %v520 = vpop.f32.mrb[0].mxu0
    %v521 = vadd.f32 0.0, %v520
    %v522 = vpop.f32.mrb[0].mxu0
    %v523 = vadd.f32 0.0, %v522
    %v524 = vpop.f32.mrb[0].mxu0
    %v525 = vadd.f32 0.0, %v524
    %526 = vmatprep.mubr.bf16.mxu0 %v271
    %527 = vmatmul.mubr.bf16.gmra.mrb[0].mxu0 %v270
    %v528 = vpop.f32.mrb[0].mxu0
    %v529 = vadd.f32 0.0, %v528
    %v530 = vpop.f32.mrb[0].mxu0
    %v531 = vadd.f32 0.0, %v530
    %v532 = vpop.f32.mrb[0].mxu0
    %v533 = vadd.f32 0.0, %v532
    %v534 = vpop.f32.mrb[0].mxu0
    %v535 = vadd.f32 0.0, %v534
    %536 = vmatprep.mubr.bf16.mxu0 %v273
    %537 = vmatmul.mubr.bf16.gmra.mrb[0].mxu0 %v272
    %v538 = vpop.f32.mrb[0].mxu0
    %v539 = vadd.f32 0.0, %v538
    %v540 = vpop.f32.mrb[0].mxu0
    %v541 = vadd.f32 0.0, %v540
    %v542 = vpop.f32.mrb[0].mxu0
    %v543 = vadd.f32 0.0, %v542
    %v544 = vpop.f32.mrb[0].mxu0
    %v545 = vadd.f32 0.0, %v544
    %546 = vmatprep.mubr.bf16.mxu0 %v275
    %547 = vmatmul.mubr.bf16.gmra.mrb[0].mxu0 %v274
    %v548 = vpop.f32.mrb[0].mxu0
    %v549 = vadd.f32 0.0, %v548
    %v550 = vpop.f32.mrb[0].mxu0
    %v551 = vadd.f32 0.0, %v550
    %v552 = vpop.f32.mrb[0].mxu0
    %v553 = vadd.f32 0.0, %v552
    %v554 = vpop.f32.mrb[0].mxu0
    %v555 = vadd.f32 0.0, %v554
    %556 = vmatprep.mubr.bf16.mxu0 %v277
    %557 = vmatmul.mubr.bf16.gmra.mrb[0].mxu0 %v276
    %v558 = vpop.f32.mrb[0].mxu0
    %v559 = vadd.f32 0.0, %v558
    %v560 = vpop.f32.mrb[0].mxu0
    %v561 = vadd.f32 0.0, %v560
    %v562 = vpop.f32.mrb[0].mxu0
    %v563 = vadd.f32 0.0, %v562
    %v564 = vpop.f32.mrb[0].mxu0
    %v565 = vadd.f32 0.0, %v564
    %566 = vdwg.mxu0
    %v567 = vadd.f32 %v134, %v489
    %v568 = vadd.f32 %v135, %v491
    %v569 = vadd.f32 %v136, %v493
    %v570 = vadd.f32 %v137, %v495
    %v571 = vadd.f32 %v138, %v499
    %v572 = vadd.f32 %v139, %v501
    %v573 = vadd.f32 %v140, %v503
    %v574 = vadd.f32 %v141, %v505
    %v575 = vadd.f32 %v142, %v509
    %v576 = vadd.f32 %v143, %v511
    %v577 = vadd.f32 %v144, %v513
    %v578 = vadd.f32 %v145, %v515
    %v579 = vadd.f32 %v146, %v519
    %v580 = vadd.f32 %v147, %v521
    %v581 = vadd.f32 %v148, %v523
    %v582 = vadd.f32 %v149, %v525
    %v583 = vadd.f32 %v150, %v529
    %v584 = vadd.f32 %v151, %v531
    %v585 = vadd.f32 %v152, %v533
    %v586 = vadd.f32 %v153, %v535
    %v587 = vadd.f32 %v154, %v539
    %v588 = vadd.f32 %v155, %v541
    %v589 = vadd.f32 %v156, %v543
    %v590 = vadd.f32 %v157, %v545
    %v591 = vadd.f32 %v158, %v549
    %v592 = vadd.f32 %v159, %v551
    %v593 = vadd.f32 %v160, %v553
    %v594 = vadd.f32 %v161, %v555
    %v595 = vadd.f32 %v162, %v559
    %v596 = vadd.f32 %v163, %v561
    %v597 = vadd.f32 %v164, %v563
    %v598 = vadd.f32 %v165, %v565
    %599 = vst [vmem:[#allocation2] sm:$0xff] %v567
    %600 = vst [vmem:[#allocation2 + $0x8] sm:$0xff] %v568
    %601 = vst [vmem:[#allocation2 + $0x10] sm:$0xff] %v569
    %602 = vst [vmem:[#allocation2 + $0x18] sm:$0xff] %v570
    %603 = vst [vmem:[#allocation2 + $0x20] sm:$0xff] %v571
    %604 = vst [vmem:[#allocation2 + $0x28] sm:$0xff] %v572
    %605 = vst [vmem:[#allocation2 + $0x30] sm:$0xff] %v573
    %606 = vst [vmem:[#allocation2 + $0x38] sm:$0xff] %v574
    %607 = vst [vmem:[#allocation2 + $0x40] sm:$0xff] %v575
    %608 = vst [vmem:[#allocation2 + $0x48] sm:$0xff] %v576
    %609 = vst [vmem:[#allocation2 + $0x50] sm:$0xff] %v577
    %610 = vst [vmem:[#allocation2 + $0x58] sm:$0xff] %v578
    %611 = vst [vmem:[#allocation2 + $0x60] sm:$0xff] %v579
    %612 = vst [vmem:[#allocation2 + $0x68] sm:$0xff] %v580
    %613 = vst [vmem:[#allocation2 + $0x70] sm:$0xff] %v581
    %614 = vst [vmem:[#allocation2 + $0x78] sm:$0xff] %v582
    %615 = vst [vmem:[#allocation2 + $0x80] sm:$0xff] %v583
    %616 = vst [vmem:[#allocation2 + $0x88] sm:$0xff] %v584
    %617 = vst [vmem:[#allocation2 + $0x90] sm:$0xff] %v585
    %618 = vst [vmem:[#allocation2 + $0x98] sm:$0xff] %v586
    %619 = vst [vmem:[#allocation2 + $0xa0] sm:$0xff] %v587
    %620 = vst [vmem:[#allocation2 + $0xa8] sm:$0xff] %v588
    %621 = vst [vmem:[#allocation2 + $0xb0] sm:$0xff] %v589
    %622 = vst [vmem:[#allocation2 + $0xb8] sm:$0xff] %v590
    %623 = vst [vmem:[#allocation2 + $0xc0] sm:$0xff] %v591
    %624 = vst [vmem:[#allocation2 + $0xc8] sm:$0xff] %v592
    %625 = vst [vmem:[#allocation2 + $0xd0] sm:$0xff] %v593
    %626 = vst [vmem:[#allocation2 + $0xd8] sm:$0xff] %v594
    %627 = vst [vmem:[#allocation2 + $0xe0] sm:$0xff] %v595
    %628 = vst [vmem:[#allocation2 + $0xe8] sm:$0xff] %v596
    %629 = vst [vmem:[#allocation2 + $0xf0] sm:$0xff] %v597
    %630 = vst [vmem:[#allocation2 + $0xf8] sm:$0xff] %v598
    // Predicated region
    $region42: #{tpu_custom_call.1} parent=1 // pred_check
      %p631 = pneg %p66
    $region43: #{tpu_custom_call.1} parent=1 // pred_check_branch
      %633 = sbr.rel (%p631) target = $region45
    $region44: #{tpu_custom_call.1} parent=1 // pred_region
      %v634 = vld [vmem:[#allocation2] sm:$0xff]
      %v635 = vld [vmem:[#allocation2 + $0x8] sm:$0xff]
      %v636 = vld [vmem:[#allocation2 + $0x10] sm:$0xff]
      %v637 = vld [vmem:[#allocation2 + $0x18] sm:$0xff]
      %v638 = vld [vmem:[#allocation2 + $0x20] sm:$0xff]
      %v639 = vld [vmem:[#allocation2 + $0x28] sm:$0xff]
      %v640 = vld [vmem:[#allocation2 + $0x30] sm:$0xff]
      %v641 = vld [vmem:[#allocation2 + $0x38] sm:$0xff]
      %v642 = vld [vmem:[#allocation2 + $0x80] sm:$0xff]
      %v643 = vld [vmem:[#allocation2 + $0x88] sm:$0xff]
      %v644 = vld [vmem:[#allocation2 + $0x90] sm:$0xff]
      %v645 = vld [vmem:[#allocation2 + $0x98] sm:$0xff]
      %v646 = vld [vmem:[#allocation2 + $0xa0] sm:$0xff]
      %v647 = vld [vmem:[#allocation2 + $0xa8] sm:$0xff]
      %v648 = vld [vmem:[#allocation2 + $0xb0] sm:$0xff]
      %v649 = vld [vmem:[#allocation2 + $0xb8] sm:$0xff]
      %v650 = vld [vmem:[#allocation2 + $0xc0] sm:$0xff]
      %v651 = vld [vmem:[#allocation2 + $0xc8] sm:$0xff]
      %v652 = vld [vmem:[#allocation2 + $0xd0] sm:$0xff]
      %v653 = vld [vmem:[#allocation2 + $0xd8] sm:$0xff]
      %v654 = vld [vmem:[#allocation2 + $0xe0] sm:$0xff]
      %v655 = vld [vmem:[#allocation2 + $0xe8] sm:$0xff]
      %v656 = vld [vmem:[#allocation2 + $0xf0] sm:$0xff]
      %v657 = vld [vmem:[#allocation2 + $0xf8] sm:$0xff]
      %v658 = vxor.u32 %v634, 2147483648
      %v659 = vxor.u32 %v635, 2147483648
      %v660 = vxor.u32 %v636, 2147483648
      %v661 = vxor.u32 %v637, 2147483648
      %v662 = vxor.u32 %v638, 2147483648
      %v663 = vxor.u32 %v639, 2147483648
      %v664 = vxor.u32 %v640, 2147483648
      %v665 = vxor.u32 %v641, 2147483648
      %v666 = vmul.f32 %v658, 1.442695
      %v667 = vpow.pop %v666
      %v668 = vmul.f32 %v659, 1.442695
      %v669 = vpow.pop %v668
      %v670 = vmul.f32 %v660, 1.442695
      %v671 = vpow.pop %v670
      %v672 = vmul.f32 %v661, 1.442695
      %v673 = vpow.pop %v672
      %v674 = vmul.f32 %v662, 1.442695
      %v675 = vpow.pop %v674
      %v676 = vmul.f32 %v663, 1.442695
      %v677 = vpow.pop %v676
      %v678 = vmul.f32 %v664, 1.442695
      %v679 = vpow.pop %v678
      %v680 = vmul.f32 %v665, 1.442695
      %v681 = vpow.pop %v680
      %v682 = vadd.f32 %v667, 1.0
      %v683 = vadd.f32 %v669, 1.0
      %v684 = vadd.f32 %v671, 1.0
      %v685 = vadd.f32 %v673, 1.0
      %v686 = vadd.f32 %v675, 1.0
      %v687 = vadd.f32 %v677, 1.0
      %v688 = vadd.f32 %v679, 1.0
      %v689 = vadd.f32 %v681, 1.0
      %v690 = vrcp.pop %v682
      %v691 = vmul.f32 1.0, %v690
      %v692 = vrcp.pop %v683
      %v693 = vmul.f32 1.0, %v692
      %v694 = vrcp.pop %v684
      %v695 = vmul.f32 1.0, %v694
      %v696 = vrcp.pop %v685
      %v697 = vmul.f32 1.0, %v696
      %v698 = vrcp.pop %v686
      %v699 = vmul.f32 1.0, %v698
      %v700 = vrcp.pop %v687
      %v701 = vmul.f32 1.0, %v700
      %v702 = vrcp.pop %v688
      %v703 = vmul.f32 1.0, %v702
      %v704 = vrcp.pop %v689
      %v705 = vmul.f32 1.0, %v704
      %v706 = vtanh.pop %v642
      %v707 = vtanh.pop %v643
      %v708 = vtanh.pop %v644
      %v709 = vtanh.pop %v645
      %v710 = vtanh.pop %v646
      %v711 = vtanh.pop %v647
      %v712 = vtanh.pop %v648
      %v713 = vtanh.pop %v649
      %v714 = vmul.f32 %v691, %v706
      %v715 = vmul.f32 %v693, %v707
      %v716 = vmul.f32 %v695, %v708
      %v717 = vmul.f32 %v697, %v709
      %v718 = vmul.f32 %v699, %v710
      %v719 = vmul.f32 %v701, %v711
      %v720 = vmul.f32 %v703, %v712
      %v721 = vmul.f32 %v705, %v713
      %v722 = vld [vmem:[%s3] sm:$0xff]
      %v723 = vld [vmem:[%s3 + $0x8] sm:$0xff]
      %v724 = vld [vmem:[%s3 + $0x10] sm:$0xff]
      %v725 = vld [vmem:[%s3 + $0x18] sm:$0xff]
      %727 = vset.pattern.permute.xlu0 0
      %728 = vperm.xlu0 %727, %v722
      %v729 = vpop.permute.xlu0 %728
      %732 = vset.pattern.permute.xlu0 0
      %733 = vperm.xlu0 %732, %v723
      %v734 = vpop.permute.xlu0 %733
      %737 = vset.pattern.permute.xlu0 0
      %738 = vperm.xlu0 %737, %v724
      %v739 = vpop.permute.xlu0 %738
      %742 = vset.pattern.permute.xlu0 0
      %743 = vperm.xlu0 %742, %v725
      %v744 = vpop.permute.xlu0 %743
      %v746 = vmul.f32 %v729, %v714
      %v747 = vmul.f32 %v729, %v715
      %v748 = vmul.f32 %v734, %v716
      %v749 = vmul.f32 %v734, %v717
      %v750 = vmul.f32 %v739, %v718
      %v751 = vmul.f32 %v739, %v719
      %v752 = vmul.f32 %v744, %v720
      %v753 = vmul.f32 %v744, %v721
      %v754 = vadd.f32 %v650, %v746
      %v755 = vadd.f32 %v651, %v747
      %v756 = vadd.f32 %v652, %v748
      %v757 = vadd.f32 %v653, %v749
      %v758 = vadd.f32 %v654, %v750
      %v759 = vadd.f32 %v655, %v751
      %v760 = vadd.f32 %v656, %v752
      %v761 = vadd.f32 %v657, %v753
      %v762 = vxor.u32 %v754, 2147483648
      %v763 = vxor.u32 %v755, 2147483648
      %v764 = vxor.u32 %v756, 2147483648
      %v765 = vxor.u32 %v757, 2147483648
      %v766 = vxor.u32 %v758, 2147483648
      %v767 = vxor.u32 %v759, 2147483648
      %v768 = vxor.u32 %v760, 2147483648
      %v769 = vxor.u32 %v761, 2147483648
      %v770 = vmul.f32 %v762, 1.442695
      %v771 = vpow.pop %v770
      %v772 = vmul.f32 %v763, 1.442695
      %v773 = vpow.pop %v772
      %v774 = vmul.f32 %v764, 1.442695
      %v775 = vpow.pop %v774
      %v776 = vmul.f32 %v765, 1.442695
      %v777 = vpow.pop %v776
      %v778 = vmul.f32 %v766, 1.442695
      %v779 = vpow.pop %v778
      %v780 = vmul.f32 %v767, 1.442695
      %v781 = vpow.pop %v780
      %v782 = vmul.f32 %v768, 1.442695
      %v783 = vpow.pop %v782
      %v784 = vmul.f32 %v769, 1.442695
      %v785 = vpow.pop %v784
      %v786 = vadd.f32 %v771, 1.0
      %v787 = vadd.f32 %v773, 1.0
      %v788 = vadd.f32 %v775, 1.0
      %v789 = vadd.f32 %v777, 1.0
      %v790 = vadd.f32 %v779, 1.0
      %v791 = vadd.f32 %v781, 1.0
      %v792 = vadd.f32 %v783, 1.0
      %v793 = vadd.f32 %v785, 1.0
      %v794 = vrcp.pop %v786
      %v795 = vmul.f32 1.0, %v794
      %v796 = vrcp.pop %v787
      %v797 = vmul.f32 1.0, %v796
      %v798 = vrcp.pop %v788
      %v799 = vmul.f32 1.0, %v798
      %v800 = vrcp.pop %v789
      %v801 = vmul.f32 1.0, %v800
      %v802 = vrcp.pop %v790
      %v803 = vmul.f32 1.0, %v802
      %v804 = vrcp.pop %v791
      %v805 = vmul.f32 1.0, %v804
      %v806 = vrcp.pop %v792
      %v807 = vmul.f32 1.0, %v806
      %v808 = vrcp.pop %v793
      %v809 = vmul.f32 1.0, %v808
      %v810 = vtanh.pop %v714
      %v811 = vtanh.pop %v715
      %v812 = vtanh.pop %v716
      %v813 = vtanh.pop %v717
      %v814 = vtanh.pop %v718
      %v815 = vtanh.pop %v719
      %v816 = vtanh.pop %v720
      %v817 = vtanh.pop %v721
      %v818 = vmul.f32 %v795, %v810
      %v819 = vmul.f32 %v797, %v811
      %v820 = vmul.f32 %v799, %v812
      %v821 = vmul.f32 %v801, %v813
      %v822 = vmul.f32 %v803, %v814
      %v823 = vmul.f32 %v805, %v815
      %v824 = vmul.f32 %v807, %v816
      %v825 = vmul.f32 %v809, %v817
      %v826 = vmax.f32 %v818, 0.0
      %v827 = vmax.f32 %v819, 0.0
      %v828 = vmax.f32 %v820, 0.0
      %v829 = vmax.f32 %v821, 0.0
      %v830 = vmax.f32 %v822, 0.0
      %v831 = vmax.f32 %v823, 0.0
      %v832 = vmax.f32 %v824, 0.0
      %v833 = vmax.f32 %v825, 0.0
      %v834 = vld [vmem:[%s4] sm:$0xff]
      %v835 = vld [vmem:[%s4 + $0x8] sm:$0xff]
      %v836 = vld [vmem:[%s4 + $0x10] sm:$0xff]
      %v837 = vld [vmem:[%s4 + $0x18] sm:$0xff]
      %839 = vset.pattern.permute.xlu0 0
      %840 = vperm.xlu0 %839, %v834
      %v841 = vpop.permute.xlu0 %840
      %844 = vset.pattern.permute.xlu0 0
      %845 = vperm.xlu0 %844, %v835
      %v846 = vpop.permute.xlu0 %845
      %849 = vset.pattern.permute.xlu0 0
      %850 = vperm.xlu0 %849, %v836
      %v851 = vpop.permute.xlu0 %850
      %854 = vset.pattern.permute.xlu0 0
      %855 = vperm.xlu0 %854, %v837
      %v856 = vpop.permute.xlu0 %855
      %v858 = vmul.f32 %v826, %v841
      %v859 = vmul.f32 %v827, %v841
      %v860 = vmul.f32 %v828, %v846
      %v861 = vmul.f32 %v829, %v846
      %v862 = vmul.f32 %v830, %v851
      %v863 = vmul.f32 %v831, %v851
      %v864 = vmul.f32 %v832, %v856
      %v865 = vmul.f32 %v833, %v856
      %v866 = vadd.f32 %v858, %v860
      %v867 = vadd.f32 %v866, %v862
      %v868 = vadd.f32 %v867, %v864
      %v869 = vrot.slane %v868, 4
      %v870 = vadd.f32 %v868, %v869
      %v871 = vrot.slane %v870, 2
      %v872 = vadd.f32 %v870, %v871
      %v873 = vrot.slane %v872, 1
      %v874 = vadd.f32 %v872, %v873
      %v875 = vadd.f32 %v859, %v861
      %v876 = vadd.f32 %v875, %v863
      %v877 = vadd.f32 %v876, %v865
      %v878 = vrot.slane %v877, 4
      %v879 = vadd.f32 %v877, %v878
      %v880 = vrot.slane %v879, 2
      %v881 = vadd.f32 %v879, %v880
      %v882 = vrot.slane %v881, 1
      %v883 = vadd.f32 %v881, %v882
      %s884 = sld [smem:[#allocation3]]
      %v885 = vstv %s884
      %v886 = vadd.f32 %v874, %v885
      %v887 = vadd.f32 %v883, %v885
      %v890 = vcombine.low %v886, %v887
      %v892 = vunpack.c.l.s4 1966171168
      %v893 = vunpack.c.0.s8 %v892
      %v894 = vlaneseq
      %v895 = vshrl.u32 %v894, 7
      %v896 = vsub.s32 %v893, %v895
      %v897 = vrot.slane %v890, %v896
      %v899 = vunpack.c.l.s4 1966171168
      %v900 = vunpack.c.0.s8 %v899
      %v901 = vlaneseq
      %v902 = vshrl.u32 %v901, 7
      %v903 = vsub.s32 %v900, %v902
      %v904 = vrot.slane %v897, %v903
      %v906 = vlaneseq
      %vm907 = vcmp.ge.s32.totalorder %v906, 0
      %vm908 = vcmp.lt.s32.totalorder %v906, 256
      %vm909 = vmand %vm907, %vm908
      %910 = vst.msk [vmem:[#allocation10] sm:$0x3] %vm909, %v904
    $region45: #{tpu_custom_call.1} parent=1 // pred_fallthru
      _
    // Predicated region
    $region46: #{tpu_custom_call.1} parent=1 // pred_check
      _
    $region47: #{tpu_custom_call.1} parent=1 // pred_check_branch
      %912 = sbr.rel (0) target = $region49
    $region48: #{tpu_custom_call.1} parent=1 // pred_region
      %s914 = ssub.s32 32, 32
      %915 = vsyncadd [#allocation6], %s914
      %s917 = sshll.u32 [#allocation10], 4
      %s918 = int_to_ptr.vmem [resolvable:$true] %s917
      %920 = dma.vmem_to_hbm [thread:$0]  %s918, 32, %s6, [#allocation6]
    $region49: #{tpu_custom_call.1} parent=1 // pred_fallthru
      _
    // Predicated region
    $region50: #{tpu_custom_call.1} parent=1 // pred_check
      _
    $region51: #{tpu_custom_call.1} parent=1 // pred_check_branch
      %922 = sbr.rel (0) target = $region53
    $region52: #{tpu_custom_call.1} parent=1 // pred_region
      %923 = dma.done [#allocation6], 32
    $region53: #{tpu_custom_call.1} parent=1 // pred_fallthru
      _
    %924 = vsyncpa [#allocation5], 1
    %925 = vsyncpa [#allocation8], 1
    %926 = vsyncpa [#allocation6], 1

</llo_original>
